<compile_context>
chip_gen: v7x
topology: tpu7x:2x2x1
jax: 0.10.0
libtpu: 0.0.40
codegen_flags: <defaults>
</compile_context>

<pallas_src>
import functools

import jax
import jax.numpy as jnp
import numpy as np
from jax.experimental import pallas as pl
from jax.experimental.pallas import tpu as pltpu


def _magnet_kernel(x_ref, w_ref, b_ref, o_ref, *, compute_dtype):
    # x_ref: (1, D, TM) native dtype   w_ref: (C, D) f32   b_ref: (C, 1) f32
    # o_ref: (1, C, TM) out dtype
    x = x_ref[0]                                    # (D, TM)
    w = w_ref[...].astype(compute_dtype)            # (C, D)
    b = b_ref[...].astype(compute_dtype)            # (C, 1)
    c_dim, d_dim = w.shape
    tm = x.shape[-1]

    # Explicit, hoisted broadcasts (one per operand), then D FMAs on the VPU.
    acc = jnp.broadcast_to(b, (c_dim, tm))
    for d in range(d_dim):
        xd = jnp.broadcast_to(x[d : d + 1, :].astype(compute_dtype), (c_dim, tm))
        wd = jnp.broadcast_to(w[:, d : d + 1], (c_dim, tm))
        acc = acc + wd * xd

    # TODO(synk): a leaner range-reduce + low-order polynomial sin could cut
    # VALU ops further on v7x; jnp.sin is used here for exactness.
    o_ref[0, :, :] = jnp.sin(acc).astype(o_ref.dtype)


def _round_down_128(v):
    return max(128, (v // 128) * 128)


def _pick_lane_tile(hw, c, d, out_itemsize, x_itemsize, batch, max_tile, vmem_budget):
    """Fixed lane tile (multiple of 128) sized against a VMEM budget."""
    # Double-buffered input + output tiles per grid step.
    per_lane_bytes = 2 * (c * out_itemsize + d * x_itemsize)
    tm = min(max_tile, max(128, vmem_budget // per_lane_bytes))
    tm = _round_down_128(tm)

    # Never exceed the (lane-padded) spatial extent.
    hw_pad = ((hw + 127) // 128) * 128
    tm = min(tm, hw_pad)

    # v7x megacore: if the batch axis can't shard across 2 TCs, make sure the
    # lane-tile axis has >= 2 parallel steps.
    if batch < 2 and hw_pad >= 256:
        tm = min(tm, _round_down_128(hw_pad // 2))
    return tm


def magnet_layer_pallas(
    x_nchw,
    weight,
    bias,
    *,
    out_dtype=jnp.float32,
    compute_dtype=jnp.float32,
    max_tile=4096,
    vmem_budget_bytes=8 << 20,
):
    """sin(conv1x1(x)) with weight [C, D], bias [C]; x in NCHW [B, D, H, W]."""
    B, D, H, W = x_nchw.shape
    C = weight.shape[0]
    HW = H * W

    # Free reshape only; x stays in its native dtype (cast in-kernel).
    x_flat = x_nchw.reshape(B, D, HW)                 # [B, D, HW]
    w = weight.astype(jnp.float32)                    # [C, D]  (tiny)
    b = bias.astype(jnp.float32).reshape(C, 1)        # [C, 1]  (tiny)

    out_itemsize = np.dtype(out_dtype).itemsize
    x_itemsize = np.dtype(x_flat.dtype).itemsize
    tm = _pick_lane_tile(HW, C, D, out_itemsize, x_itemsize, B,
                         max_tile, vmem_budget_bytes)
    grid = (B, pl.cdiv(HW, tm))                       # ragged last block is masked

    cost = pl.CostEstimate(
        flops=2 * B * HW * C * D,
        transcendentals=B * HW * C,
        bytes_accessed=(x_itemsize * B * D * HW + 4 * (C * D + C)
                        + out_itemsize * B * C * HW),
    )

    kernel = functools.partial(_magnet_kernel, compute_dtype=compute_dtype)

    out = pl.pallas_call(
        kernel,
        out_shape=jax.ShapeDtypeStruct((B, C, HW), out_dtype),
        grid_spec=pltpu.PrefetchScalarGridSpec(
            num_scalar_prefetch=0,
            grid=grid,
            in_specs=[
                pl.BlockSpec((1, D, tm), lambda bi, i: (bi, 0, i)),  # x tile
                pl.BlockSpec((C, D), lambda bi, i: (0, 0)),          # weight
                pl.BlockSpec((C, 1), lambda bi, i: (0, 0)),          # bias
            ],
            out_specs=pl.BlockSpec((1, C, tm), lambda bi, i: (bi, 0, i)),
        ),
        compiler_params=pltpu.CompilerParams(
            dimension_semantics=("parallel", "parallel"),
            vmem_limit_bytes=32 << 20,   # safe on v5e/v6e/v7x; tiles sized well below
        ),
        cost_estimate=cost,
    )(x_flat, w, b)

    return out.reshape(B, C, H, W)


def init_magnet_params(key, data_dim, hidden_channels, omega_0, alpha, beta):
    """Deterministic synthetic init mirroring MAGNetLayer.__init__."""
    k_gamma, k_w = jax.random.split(key)
    # gamma ~ Gamma(alpha, rate=beta): standard gamma / beta
    gamma = jax.random.gamma(k_gamma, alpha, (hidden_channels, data_dim)) / beta
    fan_in = data_dim
    bound = 1.0 / np.sqrt(fan_in)
    w = jax.random.uniform(
        k_w, (hidden_channels, data_dim), minval=-bound, maxval=bound,
        dtype=jnp.float32,
    )
    w = w * (2.0 * np.pi * omega_0) * gamma.astype(jnp.float32)
    b = jnp.zeros((hidden_channels,), dtype=jnp.float32)
    return w, b


def magnet_reference(x_nchw, weight, bias):
    # pure-JAX reference: sin(1x1 conv)
    y = jnp.einsum("bdhw,cd->bchw", x_nchw, weight) + bias[None, :, None, None]
    return jnp.sin(y)


if __name__ == "__main__":
    data_dim = 2
    hidden_channels = 32
    omega_0 = 1.0
    alpha = 6.0
    beta = 1.0

    key = jax.random.PRNGKey(0)
    k_param, k_x, k_x2 = jax.random.split(key, 3)

    weight, bias = init_magnet_params(
        k_param, data_dim, hidden_channels, omega_0, alpha, beta
    )

    # --- main test: B=2, 16x16 coordinate-grid-like input, NCHW ---
    B, H, W = 2, 16, 16
    x = jax.random.uniform(
        k_x, (B, data_dim, H, W), minval=-1.0, maxval=1.0, dtype=jnp.float32
    )
    out = jax.block_until_ready(magnet_layer_pallas(x, weight, bias))
    ref = magnet_reference(x, weight, bias)
    np.testing.assert_allclose(np.asarray(out), np.asarray(ref), atol=1e-5, rtol=1e-5)

    # --- ragged/single-batch test: B=1, HW=320 (exercises cdiv grid masking
    #     and the >=2-step lane grid for v7x megacore) ---
    x2 = jax.random.uniform(
        k_x2, (1, data_dim, 16, 20), minval=-1.0, maxval=1.0, dtype=jnp.float32
    )
    out2 = jax.block_until_ready(magnet_layer_pallas(x2, weight, bias))
    ref2 = magnet_reference(x2, weight, bias)
    np.testing.assert_allclose(np.asarray(out2), np.asarray(ref2), atol=1e-5, rtol=1e-5)

    # --- optional bf16 output (HBM-write heavy case): looser tolerance ---
    out_bf16 = jax.block_until_ready(
        magnet_layer_pallas(x, weight, bias, out_dtype=jnp.bfloat16)
    )
    np.testing.assert_allclose(
        np.asarray(out_bf16).astype(np.float32), np.asarray(ref), atol=2e-2, rtol=2e-2
    )

    print("KERNEL_OK")
</pallas_src>

<mosaic_0001>
module attributes {stable_mosaic.version = 11 : i64} {
  func.func @_magnet_kernel(%arg0: i32, %arg1: i32, %arg2: memref<1x2x256xf32, #tpu.memory_space<vmem>>, %arg3: memref<32x2xf32, #tpu.memory_space<vmem>>, %arg4: memref<32x1xf32, #tpu.memory_space<vmem>>, %arg5: memref<1x32x256xf32, #tpu.memory_space<vmem>>) attributes {dimension_semantics = [#tpu.dimension_semantics<parallel>, #tpu.dimension_semantics<parallel>], iteration_bounds = array<i64: 2, 1>, scalar_prefetch = 0 : i64, scratch_operands = 0 : i64, tpu.core_type = #tpu.core_type<tc>, window_params = [{transform_indices = @transform_0, window_bounds = array<i64: 1, 2, 256>}, {pipeline_mode = #tpu.pipeline_mode<synchronous>, transform_indices = @transform_1, window_bounds = array<i64: 32, 2>}, {pipeline_mode = #tpu.pipeline_mode<synchronous>, transform_indices = @transform_2, window_bounds = array<i64: 32, 1>}, {transform_indices = @transform_3, window_bounds = array<i64: 1, 32, 256>}]} {
    %c0 = arith.constant 0 : index
    %c0_0 = arith.constant 0 : index
    %c0_1 = arith.constant 0 : index
    %0 = vector.load %arg2[%c0, %c0_0, %c0_1] : memref<1x2x256xf32, #tpu.memory_space<vmem>>, vector<1x2x256xf32>
    %1 = vector.shape_cast %0 : vector<1x2x256xf32> to vector<2x256xf32>
    %c0_2 = arith.constant 0 : index
    %c0_3 = arith.constant 0 : index
    %2 = vector.load %arg3[%c0_2, %c0_3] : memref<32x2xf32, #tpu.memory_space<vmem>>, vector<32x2xf32>
    %c0_4 = arith.constant 0 : index
    %c0_5 = arith.constant 0 : index
    %3 = vector.load %arg4[%c0_4, %c0_5] : memref<32x1xf32, #tpu.memory_space<vmem>>, vector<32x1xf32>
    %4 = vector.shape_cast %3 : vector<32x1xf32> to vector<32x1xf32>
    %5 = vector.broadcast %4 : vector<32x1xf32> to vector<32x256xf32>
    %6 = vector.extract_strided_slice %1 {offsets = [0, 0], sizes = [1, 256], strides = [1, 1]} : vector<2x256xf32> to vector<1x256xf32>
    %7 = vector.shape_cast %6 : vector<1x256xf32> to vector<1x256xf32>
    %8 = vector.broadcast %7 : vector<1x256xf32> to vector<32x256xf32>
    %9 = vector.extract_strided_slice %2 {offsets = [0, 0], sizes = [32, 1], strides = [1, 1]} : vector<32x2xf32> to vector<32x1xf32>
    %10 = vector.shape_cast %9 : vector<32x1xf32> to vector<32x1xf32>
    %11 = vector.broadcast %10 : vector<32x1xf32> to vector<32x256xf32>
    %12 = arith.mulf %11, %8 : vector<32x256xf32>
    %13 = arith.addf %5, %12 : vector<32x256xf32>
    %14 = vector.extract_strided_slice %1 {offsets = [1, 0], sizes = [1, 256], strides = [1, 1]} : vector<2x256xf32> to vector<1x256xf32>
    %15 = vector.shape_cast %14 : vector<1x256xf32> to vector<1x256xf32>
    %16 = vector.broadcast %15 : vector<1x256xf32> to vector<32x256xf32>
    %17 = vector.extract_strided_slice %2 {offsets = [0, 1], sizes = [32, 1], strides = [1, 1]} : vector<32x2xf32> to vector<32x1xf32>
    %18 = vector.shape_cast %17 : vector<32x1xf32> to vector<32x1xf32>
    %19 = vector.broadcast %18 : vector<32x1xf32> to vector<32x256xf32>
    %20 = arith.mulf %19, %16 : vector<32x256xf32>
    %21 = arith.addf %13, %20 : vector<32x256xf32>
    %22 = math.sin %21 : vector<32x256xf32>
    %c0_6 = arith.constant 0 : index
    %c0_7 = arith.constant 0 : index
    %c0_8 = arith.constant 0 : index
    %23 = vector.load %arg5[%c0_6, %c0_7, %c0_8] : memref<1x32x256xf32, #tpu.memory_space<vmem>>, vector<1x32x256xf32>
    %24 = vector.shape_cast %23 : vector<1x32x256xf32> to vector<32x256xf32>
    %25 = vector.shape_cast %22 : vector<32x256xf32> to vector<1x32x256xf32>
    tpu.vector_store %arg5[%c0_6, %c0_7, %c0_8], %25 {strides = array<i32>} : memref<1x32x256xf32, #tpu.memory_space<vmem>>, vector<1x32x256xf32>,
    return
  }
  func.func @transform_0(%arg0: i32, %arg1: i32) -> (i32, i32, i32) {
    %c0_i32 = arith.constant 0 : i32
    %c0_i32_0 = arith.constant 0 : i32
    return %arg0, %c0_i32, %arg1 : i32, i32, i32
  }
  func.func @transform_1(%arg0: i32, %arg1: i32) -> (i32, i32) {
    %c0_i32 = arith.constant 0 : i32
    %c0_i32_0 = arith.constant 0 : i32
    %c0_i32_1 = arith.constant 0 : i32
    return %c0_i32, %c0_i32_0 : i32, i32
  }
  func.func @transform_2(%arg0: i32, %arg1: i32) -> (i32, i32) {
    %c0_i32 = arith.constant 0 : i32
    %c0_i32_0 = arith.constant 0 : i32
    %c0_i32_1 = arith.constant 0 : i32
    return %c0_i32, %c0_i32_0 : i32, i32
  }
  func.func @transform_3(%arg0: i32, %arg1: i32) -> (i32, i32, i32) {
    %c0_i32 = arith.constant 0 : i32
    %c0_i32_0 = arith.constant 0 : i32
    return %arg0, %c0_i32, %arg1 : i32, i32, i32
  }
}

</mosaic_0001>

<llo_original>
// kernel: tpu_custom_call.1
$region0: #{tpu_custom_call.1}
  #allocation0 [shape = 'u32[]', space=smem, size = 0x4, offset = 0x4, fixed_abs, tag = 'smem constant byte address 0x4 - core index']
  #allocation1 [shape = 'u32[144,128]{1,0:T(1,128)}', space=vmem, size = 0x12000, scoped, tag = 'internal scratch']
  %s0 = inlined_call_operand.vmem [shape: f32[2,2,256], index: 0, kind: input, shape index: {}]
  %s1 = inlined_call_operand.vmem [shape: f32[32,2], index: 1, kind: input, shape index: {}]
  %s2 = inlined_call_operand.vmem [shape: f32[32,1], index: 2, kind: input, shape index: {}]
  %s3 = inlined_call_operand.hbm [shape: f32[2,32,256], index: 3, kind: output, shape index: {}]
  %s4 = sld [smem:[#allocation0]]
  $region45: #{tpu_custom_call.1} parent=0
    _
  %s6 = ssub.s32 1, %s4
  %s7 = scalar_select 0, %s6, %s4
  $region1: #{tpu_custom_call.1} parent=0
    #allocation2 [shape = 'u8[65536]{0}', space=vmem, size = 0x10000, scoped, tag = 'output window, operand 0']
    #allocation3 [shape = 's32[2]{0}', space=sflag, size = 0x8, scoped, tag = 'scoped memory for tpu_custom_call.1']
    %8 = vsyncpa [#allocation3], 0
    %s9 = scalar_lea.sflag [#allocation3], 1
    %10 = vsyncpa %s9, 0
    loop: start=0, step=1, limit=4
    $region2: #{tpu_custom_call.1} parent=1 // loop_pre_header
      _
    $region3: #{tpu_custom_call.1} parent=1 // loop_header
      %s12 = sphi 0, %s16
      %p13 = scmp.ge.s32.totalorder %s12, 4
      %s19 = sphi 0, %s31
      %s20 = sphi 0, %s27
      %s21 = sphi 0, %s19
      %s22 = sphi 0, %s20
      %s23 = sphi 0, %s21
      %s24 = sphi 0, %s22
      %s36 = sphi 0, %s38
      %s39 = sphi 0, %s36
      %s40 = sphi 0, %s39
      %s56 = sphi 0, %s40
      %s60 = sphi 0, %s60
      %s62 = sphi 0, %s60
      %s63 = sphi 0, %s62
      %s77 = sphi 0, %s63
      %s81 = sphi 0, %s81
      %s83 = sphi 0, %s81
      %s84 = sphi 0, %s83
      %s98 = sphi 0, %s84
      %s106 = sphi 0, %s108
      %s109 = sphi 0, %s106
      %s110 = sphi 0, %s109
      %s126 = sphi 0, %s110
    $region4: #{tpu_custom_call.1} parent=1 // loop_header_branch
      %15 = sbr.rel (%p13) target = $region8
    $region5: #{tpu_custom_call.1} parent=1 // loop_body
      %s17 = ssub.s32 %s12, 1
      %s18 = ssub.s32 %s12, 2
      %s25 = sadd.s32 1, %s20
      %p26 = scmp.ge.s32.totalorder %s25, 1
      %s27 = scalar_select %p26, 0, %s25
      %s28 = sadd.s32 1, %s19
      %s29 = scalar_select %p26, %s28, %s19
      %p30 = scmp.ge.s32.totalorder %s29, 2
      %s31 = scalar_select %p30, 0, %s29
      %s32 = ssub.s32 %s19, %s31
      %s33 = ssub.s32 %s20, %s27
      %s34 = sor.u32 %s32, %s33
      %p35 = scmp.eq.s32.totalorder %s34, 0
      %s37 = sadd.s32 %s36, 1
      %s38 = scalar_select %p35, %s36, %s37
      %p41 = pneg %p35
      %p42 = scmp.eq.s32.totalorder %s12, 1
      %p43 = por %p41, %p42
      %p44 = scmp.ne.s32.totalorder %s36, %s39
      %p45 = scmp.eq.s32.totalorder %s12, 0
      %p46 = por %p44, %p45
      %p47 = scmp.ne.s32.totalorder %s36, %s39
      %p48 = scmp.eq.s32.totalorder %s17, 1
      %p49 = por %p47, %p48
      %p50 = scmp.ne.s32.totalorder %s39, %s40
      %p51 = scmp.eq.s32.totalorder %s17, 0
      %p52 = por %p50, %p51
      %p53 = scmp.ne.s32.totalorder %s39, %s40
      %p54 = scmp.eq.s32.totalorder %s18, 1
      %p55 = por %p53, %p54
      %p57 = scmp.ne.s32.totalorder %s40, %s56
      %p58 = scmp.eq.s32.totalorder %s18, 0
      %p59 = por %p57, %p58
      %s61 = sadd.s32 %s60, 1
      %p64 = scmp.eq.s32.totalorder %s12, 1
      %p65 = scmp.ne.s32.totalorder %s60, %s62
      %p66 = scmp.eq.s32.totalorder %s12, 0
      %p67 = por %p65, %p66
      %p68 = scmp.ne.s32.totalorder %s60, %s62
      %p69 = scmp.eq.s32.totalorder %s17, 1
      %p70 = por %p68, %p69
      %p71 = scmp.ne.s32.totalorder %s62, %s63
      %p72 = scmp.eq.s32.totalorder %s17, 0
      %p73 = por %p71, %p72
      %p74 = scmp.ne.s32.totalorder %s62, %s63
      %p75 = scmp.eq.s32.totalorder %s18, 1
      %p76 = por %p74, %p75
      %p78 = scmp.ne.s32.totalorder %s63, %s77
      %p79 = scmp.eq.s32.totalorder %s18, 0
      %p80 = por %p78, %p79
      %s82 = sadd.s32 %s81, 1
      %p85 = scmp.eq.s32.totalorder %s12, 1
      %p86 = scmp.ne.s32.totalorder %s81, %s83
      %p87 = scmp.eq.s32.totalorder %s12, 0
      %p88 = por %p86, %p87
      %p89 = scmp.ne.s32.totalorder %s81, %s83
      %p90 = scmp.eq.s32.totalorder %s17, 1
      %p91 = por %p89, %p90
      %p92 = scmp.ne.s32.totalorder %s83, %s84
      %p93 = scmp.eq.s32.totalorder %s17, 0
      %p94 = por %p92, %p93
      %p95 = scmp.ne.s32.totalorder %s83, %s84
      %p96 = scmp.eq.s32.totalorder %s18, 1
      %p97 = por %p95, %p96
      %p99 = scmp.ne.s32.totalorder %s84, %s98
      %p100 = scmp.eq.s32.totalorder %s18, 0
      %p101 = por %p99, %p100
      %s102 = ssub.s32 %s19, %s31
      %s103 = ssub.s32 %s20, %s27
      %s104 = sor.u32 %s102, %s103
      %p105 = scmp.eq.s32.totalorder %s104, 0
      %s107 = sadd.s32 %s106, 1
      %s108 = scalar_select %p105, %s106, %s107
      %p111 = pneg %p105
      %p112 = scmp.eq.s32.totalorder %s12, 1
      %p113 = por %p111, %p112
      %p114 = scmp.ne.s32.totalorder %s106, %s109
      %p115 = scmp.eq.s32.totalorder %s12, 0
      %p116 = por %p114, %p115
      %p117 = scmp.ne.s32.totalorder %s106, %s109
      %p118 = scmp.eq.s32.totalorder %s17, 1
      %p119 = por %p117, %p118
      %p120 = scmp.ne.s32.totalorder %s109, %s110
      %p121 = scmp.eq.s32.totalorder %s17, 0
      %p122 = por %p120, %p121
      %p123 = scmp.ne.s32.totalorder %s109, %s110
      %p124 = scmp.eq.s32.totalorder %s18, 1
      %p125 = por %p123, %p124
      %p127 = scmp.ne.s32.totalorder %s110, %s126
      %p128 = scmp.eq.s32.totalorder %s18, 0
      %p129 = por %p127, %p128
      %p130 = scmp.le.s32.totalorder 1, %s12
      %p131 = scmp.lt.s32.totalorder %s12, 3
      %p132 = pnand %p130, %p131
      %p133 = pneg %p132
      // Predicated region
      $region9: #{tpu_custom_call.1} parent=5 // pred_check
        _
      $region10: #{tpu_custom_call.1} parent=5 // pred_check_branch
        %135 = sbr.rel (%p132) target = $region12
      $region11: #{tpu_custom_call.1} parent=5 // pred_region
        %s136 = ssub.s32 %s12, 1
        // Predicated region
        $region13: #{tpu_custom_call.1} parent=11 // pred_check
          %p137 = pneg %p73
        $region14: #{tpu_custom_call.1} parent=11 // pred_check_branch
          %139 = sbr.rel (%p137) target = $region16
        $region15: #{tpu_custom_call.1} parent=11 // pred_region
          _
        $region16: #{tpu_custom_call.1} parent=11 // pred_fallthru
          _
        // Predicated region
        $region17: #{tpu_custom_call.1} parent=11 // pred_check
          %p140 = pneg %p94
        $region18: #{tpu_custom_call.1} parent=11 // pred_check_branch
          %142 = sbr.rel (%p140) target = $region20
        $region19: #{tpu_custom_call.1} parent=11 // pred_region
          _
        $region20: #{tpu_custom_call.1} parent=11 // pred_fallthru
          _
      $region12: #{tpu_custom_call.1} parent=5 // pred_fallthru
        _
      %p143 = scmp.lt.s32.totalorder %s12, 2
      // Predicated region
      $region21: #{tpu_custom_call.1} parent=5 // pred_check
        %p144 = pneg %p143
      $region22: #{tpu_custom_call.1} parent=5 // pred_check_branch
        %146 = sbr.rel (%p144) target = $region24
      $region23: #{tpu_custom_call.1} parent=5 // pred_region
        // Predicated region
        $region25: #{tpu_custom_call.1} parent=23 // pred_check
          %p147 = pneg %p46
        $region26: #{tpu_custom_call.1} parent=23 // pred_check_branch
          %149 = sbr.rel (%p147) target = $region28
        $region27: #{tpu_custom_call.1} parent=23 // pred_region
          %s150 = smul.u32 2, %s20
          %p151 = scmp.lt.s32.totalorder %s19, 1
          %s152 = scalar_select %p151, %s19, 1
          %p153 = scmp.lt.s32.totalorder %s150, 1
          %s154 = scalar_select %p153, %s150, 1
          %s155 = smul.addr %s152, 2
          %s156 = sadd.s32 %s154, %s155
          %s157 = smul.addr %s156, 2
          %s158 = scalar_lea.vmem %s0, %s157
          %s159 = smul.u32 2, %s20
        $region28: #{tpu_custom_call.1} parent=23 // pred_fallthru
          _
      $region24: #{tpu_custom_call.1} parent=5 // pred_fallthru
        _
      %p160 = scmp.le.s32.totalorder 1, %s12
      %p161 = scmp.lt.s32.totalorder %s12, 3
      %p162 = pnand %p160, %p161
      %p163 = pneg %p162
      // Predicated region
      $region29: #{tpu_custom_call.1} parent=5 // pred_check
        _
      $region30: #{tpu_custom_call.1} parent=5 // pred_check_branch
        %165 = sbr.rel (%p162) target = $region32
      $region31: #{tpu_custom_call.1} parent=5 // pred_region
        %s166 = ssub.s32 %s12, 1
        %s167 = smul.u32 2, %s22
        %p168 = scmp.lt.s32.totalorder %s21, 1
        %s169 = scalar_select %p168, %s21, 1
        %p170 = scmp.lt.s32.totalorder %s167, 1
        %s171 = scalar_select %p170, %s167, 1
        %s172 = smul.addr %s169, 2
        %s173 = sadd.s32 %s171, %s172
        %s174 = smul.addr %s173, 2
        %s175 = scalar_lea.vmem %s0, %s174
        %p176 = pneg %p52
        %p177 = pneg %p49
        %p178 = pneg %p73
        %p179 = pneg %p70
        %p180 = pneg %p94
        %p181 = pneg %p91
        %p182 = pneg %p122
        %p183 = pneg %p119
        %s184 = sand.u32 %s109, 1
        %s185 = scalar_lea.sflag [#allocation3], %s184
        %s186 = sand.u32 %s109, 1
        %s187 = smul.addr %s186, 64
        %s188 = scalar_lea.vmem [#allocation2], %s187
        %s189 = smul.u32 2, %s22
        %p190 = scmp.lt.s32.totalorder %s21, 1
        %s191 = scalar_select %p190, %s21, 1
        %p192 = scmp.lt.s32.totalorder %s189, 1
        %s193 = scalar_select %p192, %s189, 1
        %s194 = smul.addr %s191, 2
        %s195 = sadd.s32 %s193, %s194
        %s196 = smul.addr %s195, 2
        %s197 = scalar_lea.vmem %s0, %s196
        %s198 = smul.u32 2, %s22
        %s199 = smul.u32 2, %s22
        %v200 = vld [vmem:[%s197] sm:$0xf]
        %v201 = vld [vmem:[%s1] sm:$0xff]
        %v202 = vld [vmem:[%s1 + $0x8] sm:$0xff]
        %v203 = vld [vmem:[%s1 + $0x10] sm:$0xff]
        %v204 = vld [vmem:[%s1 + $0x18] sm:$0xff]
        %v205 = vld [vmem:[%s2] sm:$0xff]
        %v206 = vld [vmem:[%s2 + $0x8] sm:$0xff]
        %v207 = vld [vmem:[%s2 + $0x10] sm:$0xff]
        %v208 = vld [vmem:[%s2 + $0x18] sm:$0xff]
        %210 = vset.pattern.permute.xlu0 0
        %211 = vperm.xlu0 %210, %v205
        %v212 = vpop.permute.xlu0 %211
        %215 = vset.pattern.permute.xlu0 0
        %216 = vperm.xlu0 %215, %v206
        %v217 = vpop.permute.xlu0 %216
        %220 = vset.pattern.permute.xlu0 0
        %221 = vperm.xlu0 %220, %v207
        %v222 = vpop.permute.xlu0 %221
        %225 = vset.pattern.permute.xlu0 0
        %226 = vperm.xlu0 %225, %v208
        %v227 = vpop.permute.xlu0 %226
        %v230 = vlaneseq
        %v231 = vshrl.u32 %v230, 7
        %v232 = vsub.s32 0, %v231
        %v233 = vrot.slane %v200, %v232
        %v234 = vlaneseq
        %v235 = vshrl.u32 %v234, 7
        %v236 = vsub.s32 2, %v235
        %v237 = vrot.slane %v200, %v236
        %v240 = vlaneseq
        %v241 = vshrl.u32 %v240, 7
        %v242 = vsub.s32 0, %v241
        %v243 = vrot.slane %v233, %v242
        %v244 = vlaneseq
        %v245 = vshrl.u32 %v244, 7
        %v246 = vsub.s32 0, %v245
        %v247 = vrot.slane %v237, %v246
        %249 = vset.pattern.permute.xlu0 0
        %250 = vperm.xlu0 %249, %v201
        %v251 = vpop.permute.xlu0 %250
        %254 = vset.pattern.permute.xlu0 0
        %255 = vperm.xlu0 %254, %v202
        %v256 = vpop.permute.xlu0 %255
        %259 = vset.pattern.permute.xlu0 0
        %260 = vperm.xlu0 %259, %v203
        %v261 = vpop.permute.xlu0 %260
        %264 = vset.pattern.permute.xlu0 0
        %265 = vperm.xlu0 %264, %v204
        %v266 = vpop.permute.xlu0 %265
        %v268 = vmul.f32 %v251, %v243
        %v269 = vmul.f32 %v251, %v247
        %v270 = vmul.f32 %v256, %v243
        %v271 = vmul.f32 %v256, %v247
        %v272 = vmul.f32 %v261, %v243
        %v273 = vmul.f32 %v261, %v247
        %v274 = vmul.f32 %v266, %v243
        %v275 = vmul.f32 %v266, %v247
        %v276 = vadd.f32 %v212, %v268
        %v277 = vadd.f32 %v212, %v269
        %v278 = vadd.f32 %v217, %v270
        %v279 = vadd.f32 %v217, %v271
        %v280 = vadd.f32 %v222, %v272
        %v281 = vadd.f32 %v222, %v273
        %v282 = vadd.f32 %v227, %v274
        %v283 = vadd.f32 %v227, %v275
        %v284 = vlaneseq
        %v285 = vshrl.u32 %v284, 7
        %v286 = vsub.s32 1, %v285
        %v287 = vrot.slane %v200, %v286
        %v288 = vlaneseq
        %v289 = vshrl.u32 %v288, 7
        %v290 = vsub.s32 3, %v289
        %v291 = vrot.slane %v200, %v290
        %v294 = vlaneseq
        %v295 = vshrl.u32 %v294, 7
        %v296 = vsub.s32 1, %v295
        %v297 = vrot.slane %v287, %v296
        %v298 = vlaneseq
        %v299 = vshrl.u32 %v298, 7
        %v300 = vsub.s32 1, %v299
        %v301 = vrot.slane %v291, %v300
        %302 = vset.pattern.permute.xlu0 1
        %303 = vperm.xlu0 %302, %v201
        %v304 = vpop.permute.xlu0 %303
        %306 = vset.pattern.permute.xlu0 1
        %307 = vperm.xlu0 %306, %v202
        %v308 = vpop.permute.xlu0 %307
        %310 = vset.pattern.permute.xlu0 1
        %311 = vperm.xlu0 %310, %v203
        %v312 = vpop.permute.xlu0 %311
        %314 = vset.pattern.permute.xlu0 1
        %315 = vperm.xlu0 %314, %v204
        %v316 = vpop.permute.xlu0 %315
        %v318 = vmul.f32 %v304, %v297
        %v319 = vmul.f32 %v304, %v301
        %v320 = vmul.f32 %v308, %v297
        %v321 = vmul.f32 %v308, %v301
        %v322 = vmul.f32 %v312, %v297
        %v323 = vmul.f32 %v312, %v301
        %v324 = vmul.f32 %v316, %v297
        %v325 = vmul.f32 %v316, %v301
        %v326 = vadd.f32 %v276, %v318
        %v327 = vadd.f32 %v277, %v319
        %v328 = vadd.f32 %v278, %v320
        %v329 = vadd.f32 %v279, %v321
        %v330 = vadd.f32 %v280, %v322
        %v331 = vadd.f32 %v281, %v323
        %v332 = vadd.f32 %v282, %v324
        %v333 = vadd.f32 %v283, %v325
        %v334 = vand.u32 2147483647, %v326
        %vm335 = vcmp.le.f32.partialorder %v334, 0.7853982
        %vm336 = vcmp.lt.s32.totalorder %v326, 0
        %v337 = vand.u32 %v326, 2139095040
        %v338 = vshrl.u32 %v337, 23
        %v339 = vsub.s32 %v338, 127
        %v340 = vand.u32 2147483647, %v326
        %v341 = vand.u32 %v340, 8388607
        %v342 = vor.u32 %v341, 8388608
        %v343 = vsub.s32 0, %v342
        %v344 = vadd.s32 %v339, 1
        %vm345 = vcmp.gt.s32.totalorder %v344, 0
        %v346 = vsel %vm345, %v344, 0
        %v347 = vshrl.u32 %v346, 5
        %v348 = vand.u32 %v346, 31
        %v349 = vsub.s32 32, %v348
        %v350 = vshrl.u32 683565275, %v349
        %v351 = vshll.u32 683565275, %v348
        %v352 = vshrl.u32 2475754826, %v349
        %v353 = vor.u32 %v351, %v352
        %v354 = vshll.u32 2475754826, %v348
        %v355 = vshrl.u32 2131351028, %v349
        %v356 = vor.u32 %v354, %v355
        %v357 = vshll.u32 2131351028, %v348
        %v358 = vshrl.u32 2102212464, %v349
        %v359 = vor.u32 %v357, %v358
        %v360 = vshll.u32 2102212464, %v348
        %v361 = vshrl.u32 920167782, %v349
        %v362 = vor.u32 %v360, %v361
        %v363 = vshll.u32 920167782, %v348
        %v364 = vshrl.u32 1326507024, %v349
        %v365 = vor.u32 %v363, %v364
        %vm366 = vcmp.lt.s32.totalorder %v347, 1
        %vm367 = vcmp.lt.s32.totalorder %v347, 2
        %vm368 = vcmp.lt.s32.totalorder %v347, 3
        %vm369 = vcmp.lt.s32.totalorder %v347, 4
        %v370 = vsel %vm366, %v350, %v353
        %v371 = vsel %vm369, %v359, 2102212464
        %v372 = vsel %vm368, %v356, %v371
        %v373 = vsel %vm367, %v370, %v372
        %v374 = vsel %vm366, %v353, %v356
        %v375 = vsel %vm369, %v362, 920167782
        %v376 = vsel %vm368, %v359, %v375
        %v377 = vsel %vm367, %v374, %v376
        %v378 = vsel %vm366, %v356, %v359
        %v379 = vsel %vm369, %v365, 1326507024
        %v380 = vsel %vm368, %v362, %v379
        %v381 = vsel %vm367, %v378, %v380
        %v382 = vshll.u32 %v342, 8
        %v383 = vmul.u32.u64.compose %v382, %v381
        %v384 = vextract.low.u32 %v383
        %v385 = vextract.high.u32 %v383
        %v386 = vmul.u32.u64.compose %v382, %v377
        %v387 = vextract.low.u32 %v386
        %v388 = vextract.high.u32 %v386
        %v389 = vmul.u32 %v382, %v373
        %v390 = vadd.s32 %v385, %v387
        %vm391 = vc.u32 %v385, %v387
        %v392 = vadd.s32 %v388, 1
        %v393 = vsel %vm391, %v392, %v388
        %v394 = vadd.s32 %v389, %v393
        %v395 = vadd.s32 %v394, 536870912
        %v396 = vshrl.u32 %v395, 30
        %v397 = vshll.u32 %v396, 30
        %v398 = vsub.s32 %v394, %v397
        %vm399 = vcmp.lt.s32.totalorder %v398, 0
        %v400 = vsub.s32 0, %v398
        %v401 = vsel %vm399, %v400, %v398
        %v402 = vclz %v401
        %v403 = vsub.s32 %v402, 2
        %vm404 = vcmp.gt.s32.totalorder 0, %v403
        %v405 = vsel %vm404, 0, %v403
        %v406 = vsub.s32 32, %v405
        %v407 = vshll.u32 %v398, %v405
        %v408 = vshrl.u32 %v390, %v406
        %v409 = vor.u32 %v407, %v408
        %v410 = vsub.s32 4294967266, %v405
        %v411 = vadd.s32 %v410, 127
        %v412 = vshll.u32 %v411, 23
        %v413 = vor.u32 4788187, %v412
        %v414 = vand.u32 2147483647, %v413
        %v416 = vcvt.s32.f32 %v409
        %v417 = vmul.f32 %v416, %v414
        %v418 = vxor.u32 %v417, 2147483648
        %v419 = vsel %vm336, %v418, %v417
        %v420 = vsub.s32 4, %v396
        %v421 = vsel %vm336, %v420, %v396
        %v422 = vsel %vm335, %v326, %v419
        %v423 = vsel %vm335, 0, %v421
        %v424 = vcosq.f32.pop %v422
        %v425 = vsinq.f32.pop %v422
        %vm426 = vweird.f32 %v326
        %v427 = vadd.s32 %v423, 3
        %v428 = vand.u32 %v427, 3
        %vm429 = vcmp.lt.s32.totalorder %v428, 2
        %vm430 = vcmp.eq.s32.totalorder %v428, 0
        %v431 = vxor.u32 %v425, 2147483648
        %v432 = vsel %vm430, %v424, %v431
        %vm433 = vcmp.eq.s32.totalorder %v428, 2
        %v434 = vxor.u32 %v424, 2147483648
        %v435 = vsel %vm433, %v434, %v425
        %v436 = vsel %vm429, %v432, %v435
        %v437 = vsel %vm426, nan, %v436
        %v438 = vand.u32 2147483647, %v327
        %vm439 = vcmp.le.f32.partialorder %v438, 0.7853982
        %vm440 = vcmp.lt.s32.totalorder %v327, 0
        %v441 = vand.u32 %v327, 2139095040
        %v442 = vshrl.u32 %v441, 23
        %v443 = vsub.s32 %v442, 127
        %v444 = vand.u32 2147483647, %v327
        %v445 = vand.u32 %v444, 8388607
        %v446 = vor.u32 %v445, 8388608
        %v447 = vsub.s32 0, %v446
        %v448 = vadd.s32 %v443, 1
        %vm449 = vcmp.gt.s32.totalorder %v448, 0
        %v450 = vsel %vm449, %v448, 0
        %v451 = vshrl.u32 %v450, 5
        %v452 = vand.u32 %v450, 31
        %v453 = vsub.s32 32, %v452
        %v454 = vshrl.u32 683565275, %v453
        %v455 = vshll.u32 683565275, %v452
        %v456 = vshrl.u32 2475754826, %v453
        %v457 = vor.u32 %v455, %v456
        %v458 = vshll.u32 2475754826, %v452
        %v459 = vshrl.u32 2131351028, %v453
        %v460 = vor.u32 %v458, %v459
        %v461 = vshll.u32 2131351028, %v452
        %v462 = vshrl.u32 2102212464, %v453
        %v463 = vor.u32 %v461, %v462
        %v464 = vshll.u32 2102212464, %v452
        %v465 = vshrl.u32 920167782, %v453
        %v466 = vor.u32 %v464, %v465
        %v467 = vshll.u32 920167782, %v452
        %v468 = vshrl.u32 1326507024, %v453
        %v469 = vor.u32 %v467, %v468
        %vm470 = vcmp.lt.s32.totalorder %v451, 1
        %vm471 = vcmp.lt.s32.totalorder %v451, 2
        %vm472 = vcmp.lt.s32.totalorder %v451, 3
        %vm473 = vcmp.lt.s32.totalorder %v451, 4
        %v474 = vsel %vm470, %v454, %v457
        %v475 = vsel %vm473, %v463, 2102212464
        %v476 = vsel %vm472, %v460, %v475
        %v477 = vsel %vm471, %v474, %v476
        %v478 = vsel %vm470, %v457, %v460
        %v479 = vsel %vm473, %v466, 920167782
        %v480 = vsel %vm472, %v463, %v479
        %v481 = vsel %vm471, %v478, %v480
        %v482 = vsel %vm470, %v460, %v463
        %v483 = vsel %vm473, %v469, 1326507024
        %v484 = vsel %vm472, %v466, %v483
        %v485 = vsel %vm471, %v482, %v484
        %v486 = vshll.u32 %v446, 8
        %v487 = vmul.u32.u64.compose %v486, %v485
        %v488 = vextract.low.u32 %v487
        %v489 = vextract.high.u32 %v487
        %v490 = vmul.u32.u64.compose %v486, %v481
        %v491 = vextract.low.u32 %v490
        %v492 = vextract.high.u32 %v490
        %v493 = vmul.u32 %v486, %v477
        %v494 = vadd.s32 %v489, %v491
        %vm495 = vc.u32 %v489, %v491
        %v496 = vadd.s32 %v492, 1
        %v497 = vsel %vm495, %v496, %v492
        %v498 = vadd.s32 %v493, %v497
        %v499 = vadd.s32 %v498, 536870912
        %v500 = vshrl.u32 %v499, 30
        %v501 = vshll.u32 %v500, 30
        %v502 = vsub.s32 %v498, %v501
        %vm503 = vcmp.lt.s32.totalorder %v502, 0
        %v504 = vsub.s32 0, %v502
        %v505 = vsel %vm503, %v504, %v502
        %v506 = vclz %v505
        %v507 = vsub.s32 %v506, 2
        %vm508 = vcmp.gt.s32.totalorder 0, %v507
        %v509 = vsel %vm508, 0, %v507
        %v510 = vsub.s32 32, %v509
        %v511 = vshll.u32 %v502, %v509
        %v512 = vshrl.u32 %v494, %v510
        %v513 = vor.u32 %v511, %v512
        %v514 = vsub.s32 4294967266, %v509
        %v515 = vadd.s32 %v514, 127
        %v516 = vshll.u32 %v515, 23
        %v517 = vor.u32 4788187, %v516
        %v518 = vand.u32 2147483647, %v517
        %v520 = vcvt.s32.f32 %v513
        %v521 = vmul.f32 %v520, %v518
        %v522 = vxor.u32 %v521, 2147483648
        %v523 = vsel %vm440, %v522, %v521
        %v524 = vsub.s32 4, %v500
        %v525 = vsel %vm440, %v524, %v500
        %v526 = vsel %vm439, %v327, %v523
        %v527 = vsel %vm439, 0, %v525
        %v528 = vcosq.f32.pop %v526
        %v529 = vsinq.f32.pop %v526
        %vm530 = vweird.f32 %v327
        %v531 = vadd.s32 %v527, 3
        %v532 = vand.u32 %v531, 3
        %vm533 = vcmp.lt.s32.totalorder %v532, 2
        %vm534 = vcmp.eq.s32.totalorder %v532, 0
        %v535 = vxor.u32 %v529, 2147483648
        %v536 = vsel %vm534, %v528, %v535
        %vm537 = vcmp.eq.s32.totalorder %v532, 2
        %v538 = vxor.u32 %v528, 2147483648
        %v539 = vsel %vm537, %v538, %v529
        %v540 = vsel %vm533, %v536, %v539
        %v541 = vsel %vm530, nan, %v540
        %v542 = vand.u32 2147483647, %v328
        %vm543 = vcmp.le.f32.partialorder %v542, 0.7853982
        %vm544 = vcmp.lt.s32.totalorder %v328, 0
        %v545 = vand.u32 %v328, 2139095040
        %v546 = vshrl.u32 %v545, 23
        %v547 = vsub.s32 %v546, 127
        %v548 = vand.u32 2147483647, %v328
        %v549 = vand.u32 %v548, 8388607
        %v550 = vor.u32 %v549, 8388608
        %v551 = vsub.s32 0, %v550
        %v552 = vadd.s32 %v547, 1
        %vm553 = vcmp.gt.s32.totalorder %v552, 0
        %v554 = vsel %vm553, %v552, 0
        %v555 = vshrl.u32 %v554, 5
        %v556 = vand.u32 %v554, 31
        %v557 = vsub.s32 32, %v556
        %v558 = vshrl.u32 683565275, %v557
        %v559 = vshll.u32 683565275, %v556
        %v560 = vshrl.u32 2475754826, %v557
        %v561 = vor.u32 %v559, %v560
        %v562 = vshll.u32 2475754826, %v556
        %v563 = vshrl.u32 2131351028, %v557
        %v564 = vor.u32 %v562, %v563
        %v565 = vshll.u32 2131351028, %v556
        %v566 = vshrl.u32 2102212464, %v557
        %v567 = vor.u32 %v565, %v566
        %v568 = vshll.u32 2102212464, %v556
        %v569 = vshrl.u32 920167782, %v557
        %v570 = vor.u32 %v568, %v569
        %v571 = vshll.u32 920167782, %v556
        %v572 = vshrl.u32 1326507024, %v557
        %v573 = vor.u32 %v571, %v572
        %vm574 = vcmp.lt.s32.totalorder %v555, 1
        %vm575 = vcmp.lt.s32.totalorder %v555, 2
        %vm576 = vcmp.lt.s32.totalorder %v555, 3
        %vm577 = vcmp.lt.s32.totalorder %v555, 4
        %v578 = vsel %vm574, %v558, %v561
        %v579 = vsel %vm577, %v567, 2102212464
        %v580 = vsel %vm576, %v564, %v579
        %v581 = vsel %vm575, %v578, %v580
        %v582 = vsel %vm574, %v561, %v564
        %v583 = vsel %vm577, %v570, 920167782
        %v584 = vsel %vm576, %v567, %v583
        %v585 = vsel %vm575, %v582, %v584
        %v586 = vsel %vm574, %v564, %v567
        %v587 = vsel %vm577, %v573, 1326507024
        %v588 = vsel %vm576, %v570, %v587
        %v589 = vsel %vm575, %v586, %v588
        %v590 = vshll.u32 %v550, 8
        %v591 = vmul.u32.u64.compose %v590, %v589
        %v592 = vextract.low.u32 %v591
        %v593 = vextract.high.u32 %v591
        %v594 = vmul.u32.u64.compose %v590, %v585
        %v595 = vextract.low.u32 %v594
        %v596 = vextract.high.u32 %v594
        %v597 = vmul.u32 %v590, %v581
        %v598 = vadd.s32 %v593, %v595
        %vm599 = vc.u32 %v593, %v595
        %v600 = vadd.s32 %v596, 1
        %v601 = vsel %vm599, %v600, %v596
        %v602 = vadd.s32 %v597, %v601
        %v603 = vadd.s32 %v602, 536870912
        %v604 = vshrl.u32 %v603, 30
        %v605 = vshll.u32 %v604, 30
        %v606 = vsub.s32 %v602, %v605
        %vm607 = vcmp.lt.s32.totalorder %v606, 0
        %v608 = vsub.s32 0, %v606
        %v609 = vsel %vm607, %v608, %v606
        %v610 = vclz %v609
        %v611 = vsub.s32 %v610, 2
        %vm612 = vcmp.gt.s32.totalorder 0, %v611
        %v613 = vsel %vm612, 0, %v611
        %v614 = vsub.s32 32, %v613
        %v615 = vshll.u32 %v606, %v613
        %v616 = vshrl.u32 %v598, %v614
        %v617 = vor.u32 %v615, %v616
        %v618 = vsub.s32 4294967266, %v613
        %v619 = vadd.s32 %v618, 127
        %v620 = vshll.u32 %v619, 23
        %v621 = vor.u32 4788187, %v620
        %v622 = vand.u32 2147483647, %v621
        %v624 = vcvt.s32.f32 %v617
        %v625 = vmul.f32 %v624, %v622
        %v626 = vxor.u32 %v625, 2147483648
        %v627 = vsel %vm544, %v626, %v625
        %v628 = vsub.s32 4, %v604
        %v629 = vsel %vm544, %v628, %v604
        %v630 = vsel %vm543, %v328, %v627
        %v631 = vsel %vm543, 0, %v629
        %v632 = vcosq.f32.pop %v630
        %v633 = vsinq.f32.pop %v630
        %vm634 = vweird.f32 %v328
        %v635 = vadd.s32 %v631, 3
        %v636 = vand.u32 %v635, 3
        %vm637 = vcmp.lt.s32.totalorder %v636, 2
        %vm638 = vcmp.eq.s32.totalorder %v636, 0
        %v639 = vxor.u32 %v633, 2147483648
        %v640 = vsel %vm638, %v632, %v639
        %vm641 = vcmp.eq.s32.totalorder %v636, 2
        %v642 = vxor.u32 %v632, 2147483648
        %v643 = vsel %vm641, %v642, %v633
        %v644 = vsel %vm637, %v640, %v643
        %v645 = vsel %vm634, nan, %v644
        %v646 = vand.u32 2147483647, %v329
        %vm647 = vcmp.le.f32.partialorder %v646, 0.7853982
        %vm648 = vcmp.lt.s32.totalorder %v329, 0
        %v649 = vand.u32 %v329, 2139095040
        %v650 = vshrl.u32 %v649, 23
        %v651 = vsub.s32 %v650, 127
        %v652 = vand.u32 2147483647, %v329
        %v653 = vand.u32 %v652, 8388607
        %v654 = vor.u32 %v653, 8388608
        %v655 = vsub.s32 0, %v654
        %v656 = vadd.s32 %v651, 1
        %vm657 = vcmp.gt.s32.totalorder %v656, 0
        %v658 = vsel %vm657, %v656, 0
        %v659 = vshrl.u32 %v658, 5
        %v660 = vand.u32 %v658, 31
        %v661 = vsub.s32 32, %v660
        %v662 = vshrl.u32 683565275, %v661
        %v663 = vshll.u32 683565275, %v660
        %v664 = vshrl.u32 2475754826, %v661
        %v665 = vor.u32 %v663, %v664
        %v666 = vshll.u32 2475754826, %v660
        %v667 = vshrl.u32 2131351028, %v661
        %v668 = vor.u32 %v666, %v667
        %v669 = vshll.u32 2131351028, %v660
        %v670 = vshrl.u32 2102212464, %v661
        %v671 = vor.u32 %v669, %v670
        %v672 = vshll.u32 2102212464, %v660
        %v673 = vshrl.u32 920167782, %v661
        %v674 = vor.u32 %v672, %v673
        %v675 = vshll.u32 920167782, %v660
        %v676 = vshrl.u32 1326507024, %v661
        %v677 = vor.u32 %v675, %v676
        %vm678 = vcmp.lt.s32.totalorder %v659, 1
        %vm679 = vcmp.lt.s32.totalorder %v659, 2
        %vm680 = vcmp.lt.s32.totalorder %v659, 3
        %vm681 = vcmp.lt.s32.totalorder %v659, 4
        %v682 = vsel %vm678, %v662, %v665
        %v683 = vsel %vm681, %v671, 2102212464
        %v684 = vsel %vm680, %v668, %v683
        %v685 = vsel %vm679, %v682, %v684
        %v686 = vsel %vm678, %v665, %v668
        %v687 = vsel %vm681, %v674, 920167782
        %v688 = vsel %vm680, %v671, %v687
        %v689 = vsel %vm679, %v686, %v688
        %v690 = vsel %vm678, %v668, %v671
        %v691 = vsel %vm681, %v677, 1326507024
        %v692 = vsel %vm680, %v674, %v691
        %v693 = vsel %vm679, %v690, %v692
        %v694 = vshll.u32 %v654, 8
        %v695 = vmul.u32.u64.compose %v694, %v693
        %v696 = vextract.low.u32 %v695
        %v697 = vextract.high.u32 %v695
        %v698 = vmul.u32.u64.compose %v694, %v689
        %v699 = vextract.low.u32 %v698
        %v700 = vextract.high.u32 %v698
        %v701 = vmul.u32 %v694, %v685
        %v702 = vadd.s32 %v697, %v699
        %vm703 = vc.u32 %v697, %v699
        %v704 = vadd.s32 %v700, 1
        %v705 = vsel %vm703, %v704, %v700
        %v706 = vadd.s32 %v701, %v705
        %v707 = vadd.s32 %v706, 536870912
        %v708 = vshrl.u32 %v707, 30
        %v709 = vshll.u32 %v708, 30
        %v710 = vsub.s32 %v706, %v709
        %vm711 = vcmp.lt.s32.totalorder %v710, 0
        %v712 = vsub.s32 0, %v710
        %v713 = vsel %vm711, %v712, %v710
        %v714 = vclz %v713
        %v715 = vsub.s32 %v714, 2
        %vm716 = vcmp.gt.s32.totalorder 0, %v715
        %v717 = vsel %vm716, 0, %v715
        %v718 = vsub.s32 32, %v717
        %v719 = vshll.u32 %v710, %v717
        %v720 = vshrl.u32 %v702, %v718
        %v721 = vor.u32 %v719, %v720
        %v722 = vsub.s32 4294967266, %v717
        %v723 = vadd.s32 %v722, 127
        %v724 = vshll.u32 %v723, 23
        %v725 = vor.u32 4788187, %v724
        %v726 = vand.u32 2147483647, %v725
        %v728 = vcvt.s32.f32 %v721
        %v729 = vmul.f32 %v728, %v726
        %v730 = vxor.u32 %v729, 2147483648
        %v731 = vsel %vm648, %v730, %v729
        %v732 = vsub.s32 4, %v708
        %v733 = vsel %vm648, %v732, %v708
        %v734 = vsel %vm647, %v329, %v731
        %v735 = vsel %vm647, 0, %v733
        %v736 = vcosq.f32.pop %v734
        %v737 = vsinq.f32.pop %v734
        %vm738 = vweird.f32 %v329
        %v739 = vadd.s32 %v735, 3
        %v740 = vand.u32 %v739, 3
        %vm741 = vcmp.lt.s32.totalorder %v740, 2
        %vm742 = vcmp.eq.s32.totalorder %v740, 0
        %v743 = vxor.u32 %v737, 2147483648
        %v744 = vsel %vm742, %v736, %v743
        %vm745 = vcmp.eq.s32.totalorder %v740, 2
        %v746 = vxor.u32 %v736, 2147483648
        %v747 = vsel %vm745, %v746, %v737
        %v748 = vsel %vm741, %v744, %v747
        %v749 = vsel %vm738, nan, %v748
        %v750 = vand.u32 2147483647, %v330
        %vm751 = vcmp.le.f32.partialorder %v750, 0.7853982
        %vm752 = vcmp.lt.s32.totalorder %v330, 0
        %v753 = vand.u32 %v330, 2139095040
        %v754 = vshrl.u32 %v753, 23
        %v755 = vsub.s32 %v754, 127
        %v756 = vand.u32 2147483647, %v330
        %v757 = vand.u32 %v756, 8388607
        %v758 = vor.u32 %v757, 8388608
        %v759 = vsub.s32 0, %v758
        %v760 = vadd.s32 %v755, 1
        %vm761 = vcmp.gt.s32.totalorder %v760, 0
        %v762 = vsel %vm761, %v760, 0
        %v763 = vshrl.u32 %v762, 5
        %v764 = vand.u32 %v762, 31
        %v765 = vsub.s32 32, %v764
        %v766 = vshrl.u32 683565275, %v765
        %v767 = vshll.u32 683565275, %v764
        %v768 = vshrl.u32 2475754826, %v765
        %v769 = vor.u32 %v767, %v768
        %v770 = vshll.u32 2475754826, %v764
        %v771 = vshrl.u32 2131351028, %v765
        %v772 = vor.u32 %v770, %v771
        %v773 = vshll.u32 2131351028, %v764
        %v774 = vshrl.u32 2102212464, %v765
        %v775 = vor.u32 %v773, %v774
        %v776 = vshll.u32 2102212464, %v764
        %v777 = vshrl.u32 920167782, %v765
        %v778 = vor.u32 %v776, %v777
        %v779 = vshll.u32 920167782, %v764
        %v780 = vshrl.u32 1326507024, %v765
        %v781 = vor.u32 %v779, %v780
        %vm782 = vcmp.lt.s32.totalorder %v763, 1
        %vm783 = vcmp.lt.s32.totalorder %v763, 2
        %vm784 = vcmp.lt.s32.totalorder %v763, 3
        %vm785 = vcmp.lt.s32.totalorder %v763, 4
        %v786 = vsel %vm782, %v766, %v769
        %v787 = vsel %vm785, %v775, 2102212464
        %v788 = vsel %vm784, %v772, %v787
        %v789 = vsel %vm783, %v786, %v788
        %v790 = vsel %vm782, %v769, %v772
        %v791 = vsel %vm785, %v778, 920167782
        %v792 = vsel %vm784, %v775, %v791
        %v793 = vsel %vm783, %v790, %v792
        %v794 = vsel %vm782, %v772, %v775
        %v795 = vsel %vm785, %v781, 1326507024
        %v796 = vsel %vm784, %v778, %v795
        %v797 = vsel %vm783, %v794, %v796
        %v798 = vshll.u32 %v758, 8
        %v799 = vmul.u32.u64.compose %v798, %v797
        %v800 = vextract.low.u32 %v799
        %v801 = vextract.high.u32 %v799
        %v802 = vmul.u32.u64.compose %v798, %v793
        %v803 = vextract.low.u32 %v802
        %v804 = vextract.high.u32 %v802
        %v805 = vmul.u32 %v798, %v789
        %v806 = vadd.s32 %v801, %v803
        %vm807 = vc.u32 %v801, %v803
        %v808 = vadd.s32 %v804, 1
        %v809 = vsel %vm807, %v808, %v804
        %v810 = vadd.s32 %v805, %v809
        %v811 = vadd.s32 %v810, 536870912
        %v812 = vshrl.u32 %v811, 30
        %v813 = vshll.u32 %v812, 30
        %v814 = vsub.s32 %v810, %v813
        %vm815 = vcmp.lt.s32.totalorder %v814, 0
        %v816 = vsub.s32 0, %v814
        %v817 = vsel %vm815, %v816, %v814
        %v818 = vclz %v817
        %v819 = vsub.s32 %v818, 2
        %vm820 = vcmp.gt.s32.totalorder 0, %v819
        %v821 = vsel %vm820, 0, %v819
        %v822 = vsub.s32 32, %v821
        %v823 = vshll.u32 %v814, %v821
        %v824 = vshrl.u32 %v806, %v822
        %v825 = vor.u32 %v823, %v824
        %v826 = vsub.s32 4294967266, %v821
        %v827 = vadd.s32 %v826, 127
        %v828 = vshll.u32 %v827, 23
        %v829 = vor.u32 4788187, %v828
        %v830 = vand.u32 2147483647, %v829
        %v832 = vcvt.s32.f32 %v825
        %v833 = vmul.f32 %v832, %v830
        %v834 = vxor.u32 %v833, 2147483648
        %v835 = vsel %vm752, %v834, %v833
        %v836 = vsub.s32 4, %v812
        %v837 = vsel %vm752, %v836, %v812
        %v838 = vsel %vm751, %v330, %v835
        %v839 = vsel %vm751, 0, %v837
        %v840 = vcosq.f32.pop %v838
        %v841 = vsinq.f32.pop %v838
        %vm842 = vweird.f32 %v330
        %v843 = vadd.s32 %v839, 3
        %v844 = vand.u32 %v843, 3
        %vm845 = vcmp.lt.s32.totalorder %v844, 2
        %vm846 = vcmp.eq.s32.totalorder %v844, 0
        %v847 = vxor.u32 %v841, 2147483648
        %v848 = vsel %vm846, %v840, %v847
        %vm849 = vcmp.eq.s32.totalorder %v844, 2
        %v850 = vxor.u32 %v840, 2147483648
        %v851 = vsel %vm849, %v850, %v841
        %v852 = vsel %vm845, %v848, %v851
        %v853 = vsel %vm842, nan, %v852
        %v854 = vand.u32 2147483647, %v331
        %vm855 = vcmp.le.f32.partialorder %v854, 0.7853982
        %vm856 = vcmp.lt.s32.totalorder %v331, 0
        %v857 = vand.u32 %v331, 2139095040
        %v858 = vshrl.u32 %v857, 23
        %v859 = vsub.s32 %v858, 127
        %v860 = vand.u32 2147483647, %v331
        %v861 = vand.u32 %v860, 8388607
        %v862 = vor.u32 %v861, 8388608
        %v863 = vsub.s32 0, %v862
        %v864 = vadd.s32 %v859, 1
        %vm865 = vcmp.gt.s32.totalorder %v864, 0
        %v866 = vsel %vm865, %v864, 0
        %v867 = vshrl.u32 %v866, 5
        %v868 = vand.u32 %v866, 31
        %v869 = vsub.s32 32, %v868
        %v870 = vshrl.u32 683565275, %v869
        %v871 = vshll.u32 683565275, %v868
        %v872 = vshrl.u32 2475754826, %v869
        %v873 = vor.u32 %v871, %v872
        %v874 = vshll.u32 2475754826, %v868
        %v875 = vshrl.u32 2131351028, %v869
        %v876 = vor.u32 %v874, %v875
        %v877 = vshll.u32 2131351028, %v868
        %v878 = vshrl.u32 2102212464, %v869
        %v879 = vor.u32 %v877, %v878
        %v880 = vshll.u32 2102212464, %v868
        %v881 = vshrl.u32 920167782, %v869
        %v882 = vor.u32 %v880, %v881
        %v883 = vshll.u32 920167782, %v868
        %v884 = vshrl.u32 1326507024, %v869
        %v885 = vor.u32 %v883, %v884
        %vm886 = vcmp.lt.s32.totalorder %v867, 1
        %vm887 = vcmp.lt.s32.totalorder %v867, 2
        %vm888 = vcmp.lt.s32.totalorder %v867, 3
        %vm889 = vcmp.lt.s32.totalorder %v867, 4
        %v890 = vsel %vm886, %v870, %v873
        %v891 = vsel %vm889, %v879, 2102212464
        %v892 = vsel %vm888, %v876, %v891
        %v893 = vsel %vm887, %v890, %v892
        %v894 = vsel %vm886, %v873, %v876
        %v895 = vsel %vm889, %v882, 920167782
        %v896 = vsel %vm888, %v879, %v895
        %v897 = vsel %vm887, %v894, %v896
        %v898 = vsel %vm886, %v876, %v879
        %v899 = vsel %vm889, %v885, 1326507024
        %v900 = vsel %vm888, %v882, %v899
        %v901 = vsel %vm887, %v898, %v900
        %v902 = vshll.u32 %v862, 8
        %v903 = vmul.u32.u64.compose %v902, %v901
        %v904 = vextract.low.u32 %v903
        %v905 = vextract.high.u32 %v903
        %v906 = vmul.u32.u64.compose %v902, %v897
        %v907 = vextract.low.u32 %v906
        %v908 = vextract.high.u32 %v906
        %v909 = vmul.u32 %v902, %v893
        %v910 = vadd.s32 %v905, %v907
        %vm911 = vc.u32 %v905, %v907
        %v912 = vadd.s32 %v908, 1
        %v913 = vsel %vm911, %v912, %v908
        %v914 = vadd.s32 %v909, %v913
        %v915 = vadd.s32 %v914, 536870912
        %v916 = vshrl.u32 %v915, 30
        %v917 = vshll.u32 %v916, 30
        %v918 = vsub.s32 %v914, %v917
        %vm919 = vcmp.lt.s32.totalorder %v918, 0
        %v920 = vsub.s32 0, %v918
        %v921 = vsel %vm919, %v920, %v918
        %v922 = vclz %v921
        %v923 = vsub.s32 %v922, 2
        %vm924 = vcmp.gt.s32.totalorder 0, %v923
        %v925 = vsel %vm924, 0, %v923
        %v926 = vsub.s32 32, %v925
        %v927 = vshll.u32 %v918, %v925
        %v928 = vshrl.u32 %v910, %v926
        %v929 = vor.u32 %v927, %v928
        %v930 = vsub.s32 4294967266, %v925
        %v931 = vadd.s32 %v930, 127
        %v932 = vshll.u32 %v931, 23
        %v933 = vor.u32 4788187, %v932
        %v934 = vand.u32 2147483647, %v933
        %v936 = vcvt.s32.f32 %v929
        %v937 = vmul.f32 %v936, %v934
        %v938 = vxor.u32 %v937, 2147483648
        %v939 = vsel %vm856, %v938, %v937
        %v940 = vsub.s32 4, %v916
        %v941 = vsel %vm856, %v940, %v916
        %v942 = vsel %vm855, %v331, %v939
        %v943 = vsel %vm855, 0, %v941
        %v944 = vcosq.f32.pop %v942
        %v945 = vsinq.f32.pop %v942
        %vm946 = vweird.f32 %v331
        %v947 = vadd.s32 %v943, 3
        %v948 = vand.u32 %v947, 3
        %vm949 = vcmp.lt.s32.totalorder %v948, 2
        %vm950 = vcmp.eq.s32.totalorder %v948, 0
        %v951 = vxor.u32 %v945, 2147483648
        %v952 = vsel %vm950, %v944, %v951
        %vm953 = vcmp.eq.s32.totalorder %v948, 2
        %v954 = vxor.u32 %v944, 2147483648
        %v955 = vsel %vm953, %v954, %v945
        %v956 = vsel %vm949, %v952, %v955
        %v957 = vsel %vm946, nan, %v956
        %v958 = vand.u32 2147483647, %v332
        %vm959 = vcmp.le.f32.partialorder %v958, 0.7853982
        %vm960 = vcmp.lt.s32.totalorder %v332, 0
        %v961 = vand.u32 %v332, 2139095040
        %v962 = vshrl.u32 %v961, 23
        %v963 = vsub.s32 %v962, 127
        %v964 = vand.u32 2147483647, %v332
        %v965 = vand.u32 %v964, 8388607
        %v966 = vor.u32 %v965, 8388608
        %v967 = vsub.s32 0, %v966
        %v968 = vadd.s32 %v963, 1
        %vm969 = vcmp.gt.s32.totalorder %v968, 0
        %v970 = vsel %vm969, %v968, 0
        %v971 = vshrl.u32 %v970, 5
        %v972 = vand.u32 %v970, 31
        %v973 = vsub.s32 32, %v972
        %v974 = vshrl.u32 683565275, %v973
        %v975 = vshll.u32 683565275, %v972
        %v976 = vshrl.u32 2475754826, %v973
        %v977 = vor.u32 %v975, %v976
        %v978 = vshll.u32 2475754826, %v972
        %v979 = vshrl.u32 2131351028, %v973
        %v980 = vor.u32 %v978, %v979
        %v981 = vshll.u32 2131351028, %v972
        %v982 = vshrl.u32 2102212464, %v973
        %v983 = vor.u32 %v981, %v982
        %v984 = vshll.u32 2102212464, %v972
        %v985 = vshrl.u32 920167782, %v973
        %v986 = vor.u32 %v984, %v985
        %v987 = vshll.u32 920167782, %v972
        %v988 = vshrl.u32 1326507024, %v973
        %v989 = vor.u32 %v987, %v988
        %vm990 = vcmp.lt.s32.totalorder %v971, 1
        %vm991 = vcmp.lt.s32.totalorder %v971, 2
        %vm992 = vcmp.lt.s32.totalorder %v971, 3
        %vm993 = vcmp.lt.s32.totalorder %v971, 4
        %v994 = vsel %vm990, %v974, %v977
        %v995 = vsel %vm993, %v983, 2102212464
        %v996 = vsel %vm992, %v980, %v995
        %v997 = vsel %vm991, %v994, %v996
        %v998 = vsel %vm990, %v977, %v980
        %v999 = vsel %vm993, %v986, 920167782
        %v1000 = vsel %vm992, %v983, %v999
        %v1001 = vsel %vm991, %v998, %v1000
        %v1002 = vsel %vm990, %v980, %v983
        %v1003 = vsel %vm993, %v989, 1326507024
        %v1004 = vsel %vm992, %v986, %v1003
        %v1005 = vsel %vm991, %v1002, %v1004
        %v1006 = vshll.u32 %v966, 8
        %v1007 = vmul.u32.u64.compose %v1006, %v1005
        %v1008 = vextract.low.u32 %v1007
        %v1009 = vextract.high.u32 %v1007
        %v1010 = vmul.u32.u64.compose %v1006, %v1001
        %v1011 = vextract.low.u32 %v1010
        %v1012 = vextract.high.u32 %v1010
        %v1013 = vmul.u32 %v1006, %v997
        %v1014 = vadd.s32 %v1009, %v1011
        %vm1015 = vc.u32 %v1009, %v1011
        %v1016 = vadd.s32 %v1012, 1
        %v1017 = vsel %vm1015, %v1016, %v1012
        %v1018 = vadd.s32 %v1013, %v1017
        %v1019 = vadd.s32 %v1018, 536870912
        %v1020 = vshrl.u32 %v1019, 30
        %v1021 = vshll.u32 %v1020, 30
        %v1022 = vsub.s32 %v1018, %v1021
        %vm1023 = vcmp.lt.s32.totalorder %v1022, 0
        %v1024 = vsub.s32 0, %v1022
        %v1025 = vsel %vm1023, %v1024, %v1022
        %v1026 = vclz %v1025
        %v1027 = vsub.s32 %v1026, 2
        %vm1028 = vcmp.gt.s32.totalorder 0, %v1027
        %v1029 = vsel %vm1028, 0, %v1027
        %v1030 = vsub.s32 32, %v1029
        %v1031 = vshll.u32 %v1022, %v1029
        %v1032 = vshrl.u32 %v1014, %v1030
        %v1033 = vor.u32 %v1031, %v1032
        %v1034 = vsub.s32 4294967266, %v1029
        %v1035 = vadd.s32 %v1034, 127
        %v1036 = vshll.u32 %v1035, 23
        %v1037 = vor.u32 4788187, %v1036
        %v1038 = vand.u32 2147483647, %v1037
        %v1040 = vcvt.s32.f32 %v1033
        %v1041 = vmul.f32 %v1040, %v1038
        %v1042 = vxor.u32 %v1041, 2147483648
        %v1043 = vsel %vm960, %v1042, %v1041
        %v1044 = vsub.s32 4, %v1020
        %v1045 = vsel %vm960, %v1044, %v1020
        %v1046 = vsel %vm959, %v332, %v1043
        %v1047 = vsel %vm959, 0, %v1045
        %v1048 = vcosq.f32.pop %v1046
        %v1049 = vsinq.f32.pop %v1046
        %vm1050 = vweird.f32 %v332
        %v1051 = vadd.s32 %v1047, 3
        %v1052 = vand.u32 %v1051, 3
        %vm1053 = vcmp.lt.s32.totalorder %v1052, 2
        %vm1054 = vcmp.eq.s32.totalorder %v1052, 0
        %v1055 = vxor.u32 %v1049, 2147483648
        %v1056 = vsel %vm1054, %v1048, %v1055
        %vm1057 = vcmp.eq.s32.totalorder %v1052, 2
        %v1058 = vxor.u32 %v1048, 2147483648
        %v1059 = vsel %vm1057, %v1058, %v1049
        %v1060 = vsel %vm1053, %v1056, %v1059
        %v1061 = vsel %vm1050, nan, %v1060
        %v1062 = vand.u32 2147483647, %v333
        %vm1063 = vcmp.le.f32.partialorder %v1062, 0.7853982
        %vm1064 = vcmp.lt.s32.totalorder %v333, 0
        %v1065 = vand.u32 %v333, 2139095040
        %v1066 = vshrl.u32 %v1065, 23
        %v1067 = vsub.s32 %v1066, 127
        %v1068 = vand.u32 2147483647, %v333
        %v1069 = vand.u32 %v1068, 8388607
        %v1070 = vor.u32 %v1069, 8388608
        %v1071 = vsub.s32 0, %v1070
        %v1072 = vadd.s32 %v1067, 1
        %vm1073 = vcmp.gt.s32.totalorder %v1072, 0
        %v1074 = vsel %vm1073, %v1072, 0
        %v1075 = vshrl.u32 %v1074, 5
        %v1076 = vand.u32 %v1074, 31
        %v1077 = vsub.s32 32, %v1076
        %v1078 = vshrl.u32 683565275, %v1077
        %v1079 = vshll.u32 683565275, %v1076
        %v1080 = vshrl.u32 2475754826, %v1077
        %v1081 = vor.u32 %v1079, %v1080
        %v1082 = vshll.u32 2475754826, %v1076
        %v1083 = vshrl.u32 2131351028, %v1077
        %v1084 = vor.u32 %v1082, %v1083
        %v1085 = vshll.u32 2131351028, %v1076
        %v1086 = vshrl.u32 2102212464, %v1077
        %v1087 = vor.u32 %v1085, %v1086
        %v1088 = vshll.u32 2102212464, %v1076
        %v1089 = vshrl.u32 920167782, %v1077
        %v1090 = vor.u32 %v1088, %v1089
        %v1091 = vshll.u32 920167782, %v1076
        %v1092 = vshrl.u32 1326507024, %v1077
        %v1093 = vor.u32 %v1091, %v1092
        %vm1094 = vcmp.lt.s32.totalorder %v1075, 1
        %vm1095 = vcmp.lt.s32.totalorder %v1075, 2
        %vm1096 = vcmp.lt.s32.totalorder %v1075, 3
        %vm1097 = vcmp.lt.s32.totalorder %v1075, 4
        %v1098 = vsel %vm1094, %v1078, %v1081
        %v1099 = vsel %vm1097, %v1087, 2102212464
        %v1100 = vsel %vm1096, %v1084, %v1099
        %v1101 = vsel %vm1095, %v1098, %v1100
        %v1102 = vsel %vm1094, %v1081, %v1084
        %v1103 = vsel %vm1097, %v1090, 920167782
        %v1104 = vsel %vm1096, %v1087, %v1103
        %v1105 = vsel %vm1095, %v1102, %v1104
        %v1106 = vsel %vm1094, %v1084, %v1087
        %v1107 = vsel %vm1097, %v1093, 1326507024
        %v1108 = vsel %vm1096, %v1090, %v1107
        %v1109 = vsel %vm1095, %v1106, %v1108
        %v1110 = vshll.u32 %v1070, 8
        %v1111 = vmul.u32.u64.compose %v1110, %v1109
        %v1112 = vextract.low.u32 %v1111
        %v1113 = vextract.high.u32 %v1111
        %v1114 = vmul.u32.u64.compose %v1110, %v1105
        %v1115 = vextract.low.u32 %v1114
        %v1116 = vextract.high.u32 %v1114
        %v1117 = vmul.u32 %v1110, %v1101
        %v1118 = vadd.s32 %v1113, %v1115
        %vm1119 = vc.u32 %v1113, %v1115
        %v1120 = vadd.s32 %v1116, 1
        %v1121 = vsel %vm1119, %v1120, %v1116
        %v1122 = vadd.s32 %v1117, %v1121
        %v1123 = vadd.s32 %v1122, 536870912
        %v1124 = vshrl.u32 %v1123, 30
        %v1125 = vshll.u32 %v1124, 30
        %v1126 = vsub.s32 %v1122, %v1125
        %vm1127 = vcmp.lt.s32.totalorder %v1126, 0
        %v1128 = vsub.s32 0, %v1126
        %v1129 = vsel %vm1127, %v1128, %v1126
        %v1130 = vclz %v1129
        %v1131 = vsub.s32 %v1130, 2
        %vm1132 = vcmp.gt.s32.totalorder 0, %v1131
        %v1133 = vsel %vm1132, 0, %v1131
        %v1134 = vsub.s32 32, %v1133
        %v1135 = vshll.u32 %v1126, %v1133
        %v1136 = vshrl.u32 %v1118, %v1134
        %v1137 = vor.u32 %v1135, %v1136
        %v1138 = vsub.s32 4294967266, %v1133
        %v1139 = vadd.s32 %v1138, 127
        %v1140 = vshll.u32 %v1139, 23
        %v1141 = vor.u32 4788187, %v1140
        %v1142 = vand.u32 2147483647, %v1141
        %v1144 = vcvt.s32.f32 %v1137
        %v1145 = vmul.f32 %v1144, %v1142
        %v1146 = vxor.u32 %v1145, 2147483648
        %v1147 = vsel %vm1064, %v1146, %v1145
        %v1148 = vsub.s32 4, %v1124
        %v1149 = vsel %vm1064, %v1148, %v1124
        %v1150 = vsel %vm1063, %v333, %v1147
        %v1151 = vsel %vm1063, 0, %v1149
        %v1152 = vcosq.f32.pop %v1150
        %v1153 = vsinq.f32.pop %v1150
        %vm1154 = vweird.f32 %v333
        %v1155 = vadd.s32 %v1151, 3
        %v1156 = vand.u32 %v1155, 3
        %vm1157 = vcmp.lt.s32.totalorder %v1156, 2
        %vm1158 = vcmp.eq.s32.totalorder %v1156, 0
        %v1159 = vxor.u32 %v1153, 2147483648
        %v1160 = vsel %vm1158, %v1152, %v1159
        %vm1161 = vcmp.eq.s32.totalorder %v1156, 2
        %v1162 = vxor.u32 %v1152, 2147483648
        %v1163 = vsel %vm1161, %v1162, %v1153
        %v1164 = vsel %vm1157, %v1160, %v1163
        %v1165 = vsel %vm1154, nan, %v1164
        %1166 = vst [vmem:[%s188] sm:$0xff] %v437
        %1167 = vst [vmem:[%s188 + $0x8] sm:$0xff] %v541
        %1168 = vst [vmem:[%s188 + $0x10] sm:$0xff] %v645
        %1169 = vst [vmem:[%s188 + $0x18] sm:$0xff] %v749
        %1170 = vst [vmem:[%s188 + $0x20] sm:$0xff] %v853
        %1171 = vst [vmem:[%s188 + $0x28] sm:$0xff] %v957
        %1172 = vst [vmem:[%s188 + $0x30] sm:$0xff] %v1061
        %1173 = vst [vmem:[%s188 + $0x38] sm:$0xff] %v1165
        %s1174 = sand.u32 %s109, 1
        %s1175 = scalar_lea.sflag [#allocation3], %s1174
        %s1176 = sand.u32 %s109, 1
        %s1177 = smul.addr %s1176, 64
        %s1178 = scalar_lea.vmem [#allocation2], %s1177
        // Predicated region
        $region33: #{tpu_custom_call.1} parent=31 // pred_check
          %p1179 = pneg %p119
        $region34: #{tpu_custom_call.1} parent=31 // pred_check_branch
          %1181 = sbr.rel (%p1179) target = $region36
        $region35: #{tpu_custom_call.1} parent=31 // pred_region
          %s1182 = smul.u32 2, %s22
          %s1184 = ssub.s32 1024, 1024
          %1185 = vsyncadd %s1175, %s1184
          %s1186 = smul.addr %s21, 8
          %s1187 = sadd.s32 %s1182, %s1186
          %s1188 = smul.addr %s1187, 128
          %s1189 = scalar_lea.hbm %s3, %s1188
          %s1190 = sshll.u32 %s1178, 4
          %s1191 = int_to_ptr.vmem [resolvable:$true] %s1190
          %1196 = dma.vmem_to_hbm [thread:$0]  %s1191, 1024, %s1189, %s1175, 256, 256, 16
        $region36: #{tpu_custom_call.1} parent=31 // pred_fallthru
          _
      $region32: #{tpu_custom_call.1} parent=5 // pred_fallthru
        _
      %p1197 = scmp.le.s32.totalorder 2, %s12
      // Predicated region
      $region37: #{tpu_custom_call.1} parent=5 // pred_check
        %p1198 = pneg %p1197
      $region38: #{tpu_custom_call.1} parent=5 // pred_check_branch
        %1200 = sbr.rel (%p1198) target = $region40
      $region39: #{tpu_custom_call.1} parent=5 // pred_region
        %s1201 = ssub.s32 %s12, 2
        // Predicated region
        $region41: #{tpu_custom_call.1} parent=39 // pred_check
          %p1202 = pneg %p125
        $region42: #{tpu_custom_call.1} parent=39 // pred_check_branch
          %1204 = sbr.rel (%p1202) target = $region44
        $region43: #{tpu_custom_call.1} parent=39 // pred_region
          %s1205 = sand.u32 %s110, 1
          %s1206 = scalar_lea.sflag [#allocation3], %s1205
          %s1207 = sand.u32 %s110, 1
          %s1208 = smul.addr %s1207, 64
          %s1209 = scalar_lea.vmem [#allocation2], %s1208
          %1210 = dma.done %s1206, 1024
        $region44: #{tpu_custom_call.1} parent=39 // pred_fallthru
          _
      $region40: #{tpu_custom_call.1} parent=5 // pred_fallthru
        _
    $region6: #{tpu_custom_call.1} parent=1 // loop_footer
      %s16 = sadd.s32 1, %s12
    $region7: #{tpu_custom_call.1} parent=1 // loop_footer_branch
      %11 = sbr.rel target = $region3
    $region8: #{tpu_custom_call.1} parent=1 // loop_exit
      _
    %1211 = vsyncpa [#allocation3], 1
    %s1212 = scalar_lea.sflag [#allocation3], 1
    %1213 = vsyncpa %s1212, 1

</llo_original>
